<compile_context>
chip_gen: v5e
topology: v5e:2x2
jax: 0.10.0
libtpu: 0.0.40
codegen_flags: <defaults>
</compile_context>

<pallas_src>
import functools

import jax
import jax.numpy as jnp
from jax.experimental import pallas as pl
from jax.experimental.pallas import tpu as pltpu


def _round_up(a: int, b: int) -> int:
    return (a + b - 1) // b * b


def _vmem_capacity_bytes() -> int:
    """Physical per-core VMEM; falls back to 128 MiB if the query fails."""
    try:
        cap = getattr(pltpu.get_tpu_info(), "vmem_capacity_bytes", None)
        if cap:
            return int(cap)
    except Exception:
        pass
    return 128 << 20


def _logitnorm_loss_kernel(x_ref, tgt_ref, out_ref, *, t: float, n: int, tile_n: int):
    # x_ref: (TILE_N, C) native dtype, tgt_ref: (TILE_N, 1) int32,
    # out_ref: (8, 128) f32 lane-dense partial-sum block for this tile.
    i = pl.program_id(0)

    x_nat = x_ref[...]                                                   # (TILE_N, C) native
    x = x_nat.astype(jnp.float32)                                        # (TILE_N, C) f32

    # Row L2 norm (+ eps), matching torch.norm(x, p=2, dim=-1) + 1e-7.
    norms = jnp.sqrt(jnp.sum(x * x, axis=-1, keepdims=True)) + 1e-7      # (TILE_N, 1)

    # Fuse the two divides ((x / norms) / t) into one exact per-row reciprocal
    # plus a single VPU multiply pass.  Keep approx=False (t=0.01 amplifies
    # any per-row scale error well past the test tolerance).
    inv_scale = pl.reciprocal(norms * jnp.float32(t), approx=False)      # (TILE_N, 1) > 0

    # Row max on NATIVE-dtype x (packed vregs for bf16), rescaled afterwards:
    # max(z) = max(x) * inv_scale since inv_scale > 0, and the logsumexp shift
    # only needs to be ~max, so a lower-precision max is still exact math.
    m_x = jnp.max(x_nat, axis=-1, keepdims=True).astype(jnp.float32)     # (TILE_N, 1)

    # Numerically-stable logsumexp over z = x * inv_scale:
    #   z - max(z) = (x - max(x)) * inv_scale
    e = jnp.exp((x - m_x) * inv_scale)                                   # (TILE_N, C)
    lse = m_x * inv_scale + jnp.log(jnp.sum(e, axis=-1, keepdims=True))  # (TILE_N, 1)

    # Gather z[r, target[r]] with a one-hot select on NATIVE-dtype x, then
    # rescale (no dynamic gather on TPU).
    # TODO(synk): out-of-range targets silently contribute z_tgt = 0 (PyTorch raises).
    tgt = tgt_ref[...]                                                   # (TILE_N, 1)
    col = jax.lax.broadcasted_iota(jnp.int32, x_nat.shape, 1)            # (TILE_N, C)
    x_tgt = jnp.sum(jnp.where(col == tgt, x_nat, jnp.zeros_like(x_nat)),
                    axis=-1, keepdims=True).astype(jnp.float32)          # (TILE_N, 1)
    z_tgt = x_tgt * inv_scale

    per_example = lse - z_tgt                                            # (TILE_N, 1)

    # Mask padded batch rows (global row index >= n).
    row = i * tile_n + jax.lax.broadcasted_iota(jnp.int32, per_example.shape, 0)
    per_example = jnp.where(row < n, per_example, 0.0)

    # Lane-dense partial-sum block for this tile (unmasked vst).
    out_ref[...] = jnp.full(out_ref.shape, jnp.sum(per_example), dtype=jnp.float32)


def logitnorm_loss(x: jax.Array, target: jax.Array, t: float = 0.01,
                   tile_n: int | None = None) -> jax.Array:
    """x: [N, C] float (any float dtype), target: [N] int. Returns scalar mean loss."""
    n, c = x.shape
    itemsize = jnp.dtype(x.dtype).itemsize

    # Sublane-packing alignment for the row axis: 8 for 32-bit, 16 bf16, 32 i8/fp8.
    row_align = max(8, 32 // itemsize)

    # Generation-aware VMEM ceiling: v7x has 64 MiB per TC (leave headroom for
    # Mosaic internal scratch + double-buffered blocks); v5e/v6e have 128 MiB.
    vmem_cap = _vmem_capacity_bytes()
    small_vmem = vmem_cap <= (64 << 20)
    vmem_ceiling = (48 << 20) if small_vmem else (96 << 20)

    # Explicit per-step VMEM footprint: double-buffered native-x input block,
    # ~6 full-tile 32-bit temps (x_f32, exp arg, exp out, int32 iota, select,
    # slack), targets and the tiny double-buffered output block.
    def tile_footprint(rows: int) -> int:
        return (2 * rows * c * itemsize     # double-buffered x input block
                + 6 * rows * c * 4          # in-kernel 32-bit temps
                + 4 * rows * 4              # targets + per-row temps
                + 2 * 8 * 128 * 4)          # double-buffered output block

    if tile_n is None:
        # HBM-bound on v5e/v6e: make tiles as big as the VMEM budget and a
        # native-x byte target allow (amortize the ~0.35 us per-grid-step cost).
        native_target = (8 << 20) if small_vmem else (16 << 20)
        per_row = 2 * c * itemsize + 6 * c * 4 + 4 * 4
        budget = int(0.85 * vmem_ceiling)
        tile_n = min(budget // max(per_row, 1),
                     native_target // max(c * itemsize, 1))
        # Guarantee >= 2 grid steps when there are enough rows, so the
        # "parallel" batch axis can shard across both TensorCores (v7x).
        if n >= 2 * row_align:
            tile_n = min(tile_n, _round_up((n + 1) // 2, row_align))

    tile_n = max(row_align, (int(tile_n) // row_align) * row_align)
    tile_n = min(tile_n, _round_up(n, row_align))

    padded_n = _round_up(n, tile_n)
    num_tiles = padded_n // tile_n

    if padded_n != n:
        x = jnp.pad(x, ((0, padded_n - n), (0, 0)))
        target = jnp.pad(target, (0, padded_n - n))
    tgt2d = target.astype(jnp.int32).reshape(padded_n, 1)

    vmem_limit = int(min(vmem_ceiling,
                         max(32 << 20, int(1.25 * tile_footprint(tile_n)))))

    cost = pl.CostEstimate(
        flops=int(10 * padded_n * c),
        transcendentals=int(padded_n * c),
        bytes_accessed=int(padded_n * c * itemsize + padded_n * 4
                           + num_tiles * 8 * 128 * 4),
    )

    kernel = functools.partial(_logitnorm_loss_kernel, t=float(t), n=n, tile_n=tile_n)

    partials = pl.pallas_call(
        kernel,
        out_shape=jax.ShapeDtypeStruct((num_tiles * 8, 128), jnp.float32),
        grid=(num_tiles,),
        in_specs=[
            pl.BlockSpec((tile_n, c), lambda i: (i, 0)),   # x: native dtype, no up-cast
            pl.BlockSpec((tile_n, 1), lambda i: (i, 0)),   # targets
        ],
        out_specs=pl.BlockSpec((8, 128), lambda i: (i, 0)),
        compiler_params=pltpu.CompilerParams(
            dimension_semantics=("parallel",),             # megacore sharding on v7x
            vmem_limit_bytes=vmem_limit,
        ),
        cost_estimate=cost,
    )(x, tgt2d)

    # Every lane of each (8,128) block holds the same per-tile sum, so a dense
    # reduce (divided by 1024*N) replaces the old strided [:, 0, 0] gather.
    return jnp.sum(partials) / jnp.float32(1024 * n)


if __name__ == "__main__":
    key = jax.random.PRNGKey(0)
    kx, kt = jax.random.split(key)

    # Small synthetic shapes: batch=20 (not a tile multiple -> exercises padding
    # + masking), classes=128 (lane-dense).
    N, C = 20, 128
    x = jax.random.normal(kx, (N, C), dtype=jnp.float32)
    target = jax.random.randint(kt, (N,), 0, C, dtype=jnp.int32)

    # Pure-JAX reference (same math as the PyTorch module, reduction='mean').
    norms = jnp.linalg.norm(x, axis=-1, keepdims=True) + 1e-7
    z = (x / norms) / 0.01
    ref = jnp.mean(
        jax.nn.logsumexp(z, axis=-1)
        - jnp.take_along_axis(z, target[:, None], axis=-1)[:, 0]
    )

    # Auto-tiled path (N=20 -> 2 tiles of 16 rows: exercises the >=2-step
    # megacore split plus batch padding/masking).
    loss_auto = logitnorm_loss(x, target, t=0.01)
    jax.block_until_ready(loss_auto)
    assert jnp.allclose(loss_auto, ref, rtol=2e-5, atol=1e-4), (loss_auto, ref)

    # Explicit small tiles (3 grid steps) to exercise the multi-step pipeline.
    loss_t8 = logitnorm_loss(x, target, t=0.01, tile_n=8)
    jax.block_until_ready(loss_t8)
    assert jnp.allclose(loss_t8, ref, rtol=2e-5, atol=1e-4), (loss_t8, ref)

    print("KERNEL_OK")
</pallas_src>

<mosaic_0001>
module attributes {stable_mosaic.version = 11 : i64} {
  func.func @_logitnorm_loss_kernel(%arg0: i32, %arg1: memref<16x128xf32, #tpu.memory_space<vmem>>, %arg2: memref<16x1xi32, #tpu.memory_space<vmem>>, %arg3: memref<8x128xf32, #tpu.memory_space<vmem>>) attributes {dimension_semantics = [#tpu.dimension_semantics<parallel>], iteration_bounds = array<i64: 2>, scalar_prefetch = 0 : i64, scratch_operands = 0 : i64, tpu.core_type = #tpu.core_type<tc>, window_params = [{transform_indices = @transform_0, window_bounds = array<i64: 16, 128>}, {transform_indices = @transform_1, window_bounds = array<i64: 16, 1>}, {transform_indices = @transform_2, window_bounds = array<i64: 8, 128>}]} {
    %c0 = arith.constant 0 : index
    %c0_0 = arith.constant 0 : index
    %0 = vector.load %arg1[%c0, %c0_0] : memref<16x128xf32, #tpu.memory_space<vmem>>, vector<16x128xf32>
    %1 = arith.mulf %0, %0 : vector<16x128xf32>
    %cst = arith.constant dense<0.000000e+00> : vector<16xf32>
    %2 = vector.multi_reduction <add>, %1, %cst [1] : vector<16x128xf32> to vector<16xf32>
    %3 = vector.shape_cast %2 : vector<16xf32> to vector<16x1xf32>
    %4 = math.sqrt %3 : vector<16x1xf32>
    %cst_1 = arith.constant 1.000000e-07 : f32
    %5 = vector.broadcast %cst_1 : f32 to vector<16x1xf32>
    %6 = arith.addf %4, %5 : vector<16x1xf32>
    %cst_2 = arith.constant 0.00999999977 : f32
    %7 = vector.broadcast %cst_2 : f32 to vector<16x1xf32>
    %8 = arith.mulf %6, %7 : vector<16x1xf32>
    %9 = tpu.reciprocal %8 : vector<16x1xf32> -> vector<16x1xf32>
    %cst_3 = arith.constant dense<0xFF800000> : vector<16xf32>
    %10 = vector.multi_reduction <maximumf>, %0, %cst_3 [1] : vector<16x128xf32> to vector<16xf32>
    %11 = vector.shape_cast %10 : vector<16xf32> to vector<16x1xf32>
    %12 = vector.broadcast %11 : vector<16x1xf32> to vector<16x128xf32>
    %13 = arith.subf %0, %12 : vector<16x128xf32>
    %14 = vector.broadcast %9 : vector<16x1xf32> to vector<16x128xf32>
    %15 = arith.mulf %13, %14 : vector<16x128xf32>
    %16 = math.exp %15 : vector<16x128xf32>
    %17 = arith.mulf %11, %9 : vector<16x1xf32>
    %cst_4 = arith.constant dense<0.000000e+00> : vector<16xf32>
    %18 = vector.multi_reduction <add>, %16, %cst_4 [1] : vector<16x128xf32> to vector<16xf32>
    %19 = vector.shape_cast %18 : vector<16xf32> to vector<16x1xf32>
    %20 = math.log %19 : vector<16x1xf32>
    %21 = arith.addf %17, %20 : vector<16x1xf32>
    %c0_5 = arith.constant 0 : index
    %c0_6 = arith.constant 0 : index
    %22 = vector.load %arg2[%c0_5, %c0_6] : memref<16x1xi32, #tpu.memory_space<vmem>>, vector<16x1xi32>
    %23 = tpu.iota {dimensions = array<i32: 1>} : vector<16x128xi32>
    %24 = vector.broadcast %22 : vector<16x1xi32> to vector<16x128xi32>
    %25 = arith.cmpi eq, %23, %24 : vector<16x128xi32>
    %cst_7 = arith.constant 0.000000e+00 : f32
    %26 = vector.broadcast %cst_7 : f32 to vector<16x128xf32>
    %27 = arith.select %25, %0, %26 : vector<16x128xi1>, vector<16x128xf32>
    %cst_8 = arith.constant dense<0.000000e+00> : vector<16xf32>
    %28 = vector.multi_reduction <add>, %27, %cst_8 [1] : vector<16x128xf32> to vector<16xf32>
    %29 = vector.shape_cast %28 : vector<16xf32> to vector<16x1xf32>
    %30 = arith.mulf %29, %9 : vector<16x1xf32>
    %31 = arith.subf %21, %30 : vector<16x1xf32>
    %c16_i32 = arith.constant 16 : i32
    %32 = arith.muli %arg0, %c16_i32 : i32
    %33 = tpu.iota {dimensions = array<i32: 0>} : vector<16x1xi32>
    %34 = vector.broadcast %32 : i32 to vector<16x1xi32>
    %35 = arith.addi %34, %33 : vector<16x1xi32>
    %c20_i32 = arith.constant 20 : i32
    %36 = vector.broadcast %c20_i32 : i32 to vector<16x1xi32>
    %37 = arith.cmpi slt, %35, %36 : vector<16x1xi32>
    %cst_9 = arith.constant 0.000000e+00 : f32
    %38 = vector.broadcast %cst_9 : f32 to vector<16x1xf32>
    %39 = arith.select %37, %31, %38 : vector<16x1xi1>, vector<16x1xf32>
    %40 = vector.shape_cast %39 : vector<16x1xf32> to vector<1x16x1xf32>
    %cst_10 = arith.constant dense<0.000000e+00> : vector<1xf32>
    %41 = vector.multi_reduction <add>, %40, %cst_10 [1, 2] : vector<1x16x1xf32> to vector<1xf32>
    %42 = vector.shape_cast %41 : vector<1xf32> to vector<1x1x1xf32>
    %43 = vector.extract %42[0, 0, 0] : f32 from vector<1x1x1xf32>
    %44 = vector.broadcast %43 : f32 to vector<8x128xf32>
    %c0_11 = arith.constant 0 : index
    %c0_12 = arith.constant 0 : index
    %45 = vector.load %arg3[%c0_11, %c0_12] : memref<8x128xf32, #tpu.memory_space<vmem>>, vector<8x128xf32>
    tpu.vector_store %arg3[%c0_11, %c0_12], %44 {strides = array<i32>} : memref<8x128xf32, #tpu.memory_space<vmem>>, vector<8x128xf32>,
    return
  }
  func.func @transform_0(%arg0: i32) -> (i32, i32) {
    %c0_i32 = arith.constant 0 : i32
    %c0_i32_0 = arith.constant 0 : i32
    return %arg0, %c0_i32 : i32, i32
  }
  func.func @transform_1(%arg0: i32) -> (i32, i32) {
    %c0_i32 = arith.constant 0 : i32
    %c0_i32_0 = arith.constant 0 : i32
    return %arg0, %c0_i32 : i32, i32
  }
  func.func @transform_2(%arg0: i32) -> (i32, i32) {
    %c0_i32 = arith.constant 0 : i32
    %c0_i32_0 = arith.constant 0 : i32
    return %arg0, %c0_i32 : i32, i32
  }
}

</mosaic_0001>

<llo_original>
// kernel: tpu_custom_call.1
$region0: #{tpu_custom_call.1}
  #allocation0 [shape = 'u32[]', space=smem, size = 0x4, offset = 0x4, fixed_abs, tag = 'smem constant byte address 0x4 - core index']
  #allocation1 [shape = 'u32[72,128]{1,0:T(1,128)}', space=vmem, size = 0x9000, scoped, tag = 'internal scratch']
  %s0 = inlined_call_operand.vmem [shape: f32[32,128], index: 0, kind: input, shape index: {}]
  %s1 = inlined_call_operand.vmem [shape: s32[32,1], index: 1, kind: input, shape index: {}]
  %s2 = inlined_call_operand.hbm [shape: f32[16,128], index: 2, kind: output, shape index: {}]
  %s3 = sld [smem:[#allocation0]]
  $region41: #{tpu_custom_call.1} parent=0
    _
  %s5 = ssub.s32 1, %s3
  %s6 = scalar_select 0, %s5, %s3
  $region1: #{tpu_custom_call.1} parent=0
    #allocation2 [shape = 'u8[8192]{0}', space=vmem, size = 0x2000, scoped, tag = 'output window, operand 0']
    #allocation3 [shape = 's32[2]{0}', space=sflag, size = 0x8, scoped, tag = 'scoped memory for tpu_custom_call.1']
    %7 = vsyncpa [#allocation3], 0
    %s8 = scalar_lea.sflag [#allocation3], 1
    %9 = vsyncpa %s8, 0
    loop: start=0, step=1, limit=4
    $region2: #{tpu_custom_call.1} parent=1 // loop_pre_header
      _
    $region3: #{tpu_custom_call.1} parent=1 // loop_header
      %s11 = sphi 0, %s15
      %p12 = scmp.ge.s32.totalorder %s11, 4
      %s21 = sphi 0, %s23
      %s24 = sphi 0, %s21
      %s25 = sphi 0, %s24
      %s41 = sphi 0, %s25
      %s47 = sphi 0, %s49
      %s50 = sphi 0, %s47
      %s51 = sphi 0, %s50
      %s67 = sphi 0, %s51
      %s73 = sphi 0, %s75
      %s76 = sphi 0, %s73
      %s77 = sphi 0, %s76
      %s93 = sphi 0, %s77
    $region4: #{tpu_custom_call.1} parent=1 // loop_header_branch
      %14 = sbr.rel (%p12) target = $region8
    $region5: #{tpu_custom_call.1} parent=1 // loop_body
      %s16 = ssub.s32 %s11, 1
      %s17 = ssub.s32 %s11, 2
      %s18 = sadd.s32 %s11, 1
      %s19 = ssub.s32 %s11, %s18
      %p20 = scmp.eq.s32.totalorder %s19, 0
      %s22 = sadd.s32 %s21, 1
      %s23 = scalar_select %p20, %s21, %s22
      %p26 = pneg %p20
      %p27 = scmp.eq.s32.totalorder %s11, 1
      %p28 = por %p26, %p27
      %p29 = scmp.ne.s32.totalorder %s21, %s24
      %p30 = scmp.eq.s32.totalorder %s11, 0
      %p31 = por %p29, %p30
      %p32 = scmp.ne.s32.totalorder %s21, %s24
      %p33 = scmp.eq.s32.totalorder %s16, 1
      %p34 = por %p32, %p33
      %p35 = scmp.ne.s32.totalorder %s24, %s25
      %p36 = scmp.eq.s32.totalorder %s16, 0
      %p37 = por %p35, %p36
      %p38 = scmp.ne.s32.totalorder %s24, %s25
      %p39 = scmp.eq.s32.totalorder %s17, 1
      %p40 = por %p38, %p39
      %p42 = scmp.ne.s32.totalorder %s25, %s41
      %p43 = scmp.eq.s32.totalorder %s17, 0
      %p44 = por %p42, %p43
      %s45 = ssub.s32 %s11, %s18
      %p46 = scmp.eq.s32.totalorder %s45, 0
      %s48 = sadd.s32 %s47, 1
      %s49 = scalar_select %p46, %s47, %s48
      %p52 = pneg %p46
      %p53 = scmp.eq.s32.totalorder %s11, 1
      %p54 = por %p52, %p53
      %p55 = scmp.ne.s32.totalorder %s47, %s50
      %p56 = scmp.eq.s32.totalorder %s11, 0
      %p57 = por %p55, %p56
      %p58 = scmp.ne.s32.totalorder %s47, %s50
      %p59 = scmp.eq.s32.totalorder %s16, 1
      %p60 = por %p58, %p59
      %p61 = scmp.ne.s32.totalorder %s50, %s51
      %p62 = scmp.eq.s32.totalorder %s16, 0
      %p63 = por %p61, %p62
      %p64 = scmp.ne.s32.totalorder %s50, %s51
      %p65 = scmp.eq.s32.totalorder %s17, 1
      %p66 = por %p64, %p65
      %p68 = scmp.ne.s32.totalorder %s51, %s67
      %p69 = scmp.eq.s32.totalorder %s17, 0
      %p70 = por %p68, %p69
      %s71 = ssub.s32 %s11, %s18
      %p72 = scmp.eq.s32.totalorder %s71, 0
      %s74 = sadd.s32 %s73, 1
      %s75 = scalar_select %p72, %s73, %s74
      %p78 = pneg %p72
      %p79 = scmp.eq.s32.totalorder %s11, 1
      %p80 = por %p78, %p79
      %p81 = scmp.ne.s32.totalorder %s73, %s76
      %p82 = scmp.eq.s32.totalorder %s11, 0
      %p83 = por %p81, %p82
      %p84 = scmp.ne.s32.totalorder %s73, %s76
      %p85 = scmp.eq.s32.totalorder %s16, 1
      %p86 = por %p84, %p85
      %p87 = scmp.ne.s32.totalorder %s76, %s77
      %p88 = scmp.eq.s32.totalorder %s16, 0
      %p89 = por %p87, %p88
      %p90 = scmp.ne.s32.totalorder %s76, %s77
      %p91 = scmp.eq.s32.totalorder %s17, 1
      %p92 = por %p90, %p91
      %p94 = scmp.ne.s32.totalorder %s77, %s93
      %p95 = scmp.eq.s32.totalorder %s17, 0
      %p96 = por %p94, %p95
      %p97 = scmp.le.s32.totalorder 1, %s11
      %p98 = scmp.lt.s32.totalorder %s11, 3
      %p99 = pnand %p97, %p98
      %p100 = pneg %p99
      // Predicated region
      $region9: #{tpu_custom_call.1} parent=5 // pred_check
        _
      $region10: #{tpu_custom_call.1} parent=5 // pred_check_branch
        %102 = sbr.rel (%p99) target = $region12
      $region11: #{tpu_custom_call.1} parent=5 // pred_region
        %s103 = ssub.s32 %s11, 1
      $region12: #{tpu_custom_call.1} parent=5 // pred_fallthru
        _
      %p104 = scmp.lt.s32.totalorder %s11, 2
      // Predicated region
      $region13: #{tpu_custom_call.1} parent=5 // pred_check
        %p105 = pneg %p104
      $region14: #{tpu_custom_call.1} parent=5 // pred_check_branch
        %107 = sbr.rel (%p105) target = $region16
      $region15: #{tpu_custom_call.1} parent=5 // pred_region
        // Predicated region
        $region17: #{tpu_custom_call.1} parent=15 // pred_check
          %p108 = pneg %p31
        $region18: #{tpu_custom_call.1} parent=15 // pred_check_branch
          %110 = sbr.rel (%p108) target = $region20
        $region19: #{tpu_custom_call.1} parent=15 // pred_region
          %s111 = smul.u32 2, %s11
          %p112 = scmp.lt.s32.totalorder %s111, 3
          %s113 = scalar_select %p112, %s111, 3
          %s114 = smul.addr %s113, 8
          %s115 = scalar_lea.vmem %s0, %s114
          %s116 = smul.u32 2, %s11
        $region20: #{tpu_custom_call.1} parent=15 // pred_fallthru
          _
        // Predicated region
        $region21: #{tpu_custom_call.1} parent=15 // pred_check
          %p117 = pneg %p57
        $region22: #{tpu_custom_call.1} parent=15 // pred_check_branch
          %119 = sbr.rel (%p117) target = $region24
        $region23: #{tpu_custom_call.1} parent=15 // pred_region
          %s120 = smul.u32 2, %s11
          %p121 = scmp.lt.s32.totalorder %s120, 3
          %s122 = scalar_select %p121, %s120, 3
          %s123 = smul.addr %s122, 8
          %s124 = scalar_lea.vmem %s1, %s123
          %s125 = smul.u32 2, %s11
        $region24: #{tpu_custom_call.1} parent=15 // pred_fallthru
          _
      $region16: #{tpu_custom_call.1} parent=5 // pred_fallthru
        _
      %p126 = scmp.le.s32.totalorder 1, %s11
      %p127 = scmp.lt.s32.totalorder %s11, 3
      %p128 = pnand %p126, %p127
      %p129 = pneg %p128
      // Predicated region
      $region25: #{tpu_custom_call.1} parent=5 // pred_check
        _
      $region26: #{tpu_custom_call.1} parent=5 // pred_check_branch
        %131 = sbr.rel (%p128) target = $region28
      $region27: #{tpu_custom_call.1} parent=5 // pred_region
        %s132 = ssub.s32 %s11, 1
        %s133 = smul.u32 2, %s16
        %p134 = scmp.lt.s32.totalorder %s133, 3
        %s135 = scalar_select %p134, %s133, 3
        %s136 = smul.addr %s135, 8
        %s137 = scalar_lea.vmem %s0, %s136
        %p138 = pneg %p37
        %p139 = pneg %p34
        %s140 = smul.u32 2, %s16
        %p141 = scmp.lt.s32.totalorder %s140, 3
        %s142 = scalar_select %p141, %s140, 3
        %s143 = smul.addr %s142, 8
        %s144 = scalar_lea.vmem %s1, %s143
        %p145 = pneg %p63
        %p146 = pneg %p60
        %p147 = pneg %p89
        %p148 = pneg %p86
        %s149 = sand.u32 %s76, 1
        %s150 = scalar_lea.sflag [#allocation3], %s149
        %s151 = sand.u32 %s76, 1
        %s152 = smul.addr %s151, 8
        %s153 = scalar_lea.vmem [#allocation2], %s152
        %s154 = smul.u32 2, %s16
        %p155 = scmp.lt.s32.totalorder %s154, 3
        %s156 = scalar_select %p155, %s154, 3
        %s157 = smul.addr %s156, 8
        %s158 = scalar_lea.vmem %s0, %s157
        %s159 = smul.u32 2, %s16
        %s160 = smul.u32 2, %s16
        %p161 = scmp.lt.s32.totalorder %s160, 3
        %s162 = scalar_select %p161, %s160, 3
        %s163 = smul.addr %s162, 8
        %s164 = scalar_lea.vmem %s1, %s163
        %s165 = smul.u32 2, %s16
        %v166 = vld [vmem:[%s158] sm:$0xff]
        %v167 = vld [vmem:[%s158 + $0x8] sm:$0xff]
        %v168 = vmul.f32 %v166, %v166
        %v169 = vmul.f32 %v167, %v167
        %170 = vadd.xlane.f32.xlu0 %v168
        %v171 = vpop.xlane.xlu0 %170
        %172 = vadd.xlane.f32.xlu0 %v169
        %v173 = vpop.xlane.xlu0 %172
        %v174 = vrsqrt.pop %v171
        %v175 = vmul.f32 %v174, %v171
        %v176 = vmul.f32 %v175, %v174
        %v177 = vmul.f32 0.5, %v176
        %v178 = vsub.f32 1.5, %v177
        %v179 = vmul.f32 %v174, %v178
        %v180 = vmul.f32 %v171, %v179
        %vm181 = vcmp.eq.f32.partialorder %v171, inf
        %v182 = vsel %vm181, %v171, %v180
        %vm183 = vcmp.eq.f32.partialorder %v171, 0.0
        %v184 = vand.u32 %v171, 2147483648
        %v185 = vsel %vm183, %v184, %v182
        %v186 = vrsqrt.pop %v173
        %v187 = vmul.f32 %v186, %v173
        %v188 = vmul.f32 %v187, %v186
        %v189 = vmul.f32 0.5, %v188
        %v190 = vsub.f32 1.5, %v189
        %v191 = vmul.f32 %v186, %v190
        %v192 = vmul.f32 %v173, %v191
        %vm193 = vcmp.eq.f32.partialorder %v173, inf
        %v194 = vsel %vm193, %v173, %v192
        %vm195 = vcmp.eq.f32.partialorder %v173, 0.0
        %v196 = vand.u32 %v173, 2147483648
        %v197 = vsel %vm195, %v196, %v194
        %v198 = vadd.f32 %v185, 1e-07
        %v199 = vadd.f32 %v197, 1e-07
        %v200 = vmul.f32 %v198, 0.01
        %v201 = vmul.f32 %v199, 0.01
        %v202 = vrcp.pop %v200
        %v203 = vmul.f32 %v200, %v202
        %v204 = vsub.f32 1.0, %v203
        %v205 = vmul.f32 %v202, %v204
        %v206 = vadd.f32 %v202, %v205
        %vm207 = vweird.f32 %v200
        %vm208 = vweird.f32 %v202
        %vm209 = vmor %vm207, %vm208
        %v210 = vsel %vm209, %v202, %v206
        %v211 = vand.u32 2147483647, %v200
        %vm212 = vcmp.eq.f32.partialorder %v211, 8.507059e+37
        %v213 = vand.u32 %v200, 2147483648
        %v214 = vor.u32 1.1754944e-38, %v213
        %v215 = vsel %vm212, %v214, %v210
        %v216 = vrcp.pop %v201
        %v217 = vmul.f32 %v201, %v216
        %v218 = vsub.f32 1.0, %v217
        %v219 = vmul.f32 %v216, %v218
        %v220 = vadd.f32 %v216, %v219
        %vm221 = vweird.f32 %v201
        %vm222 = vweird.f32 %v216
        %vm223 = vmor %vm221, %vm222
        %v224 = vsel %vm223, %v216, %v220
        %v225 = vand.u32 2147483647, %v201
        %vm226 = vcmp.eq.f32.partialorder %v225, 8.507059e+37
        %v227 = vand.u32 %v201, 2147483648
        %v228 = vor.u32 1.1754944e-38, %v227
        %v229 = vsel %vm226, %v228, %v224
        %230 = vmax.xlane.f32.xlu0 %v166
        %v231 = vpop.xlane.xlu0 %230
        %232 = vmax.xlane.f32.xlu0 %v167
        %v233 = vpop.xlane.xlu0 %232
        %v234 = vsub.f32 %v166, %v231
        %v235 = vsub.f32 %v167, %v233
        %v236 = vmul.f32 %v234, %v215
        %v237 = vmul.f32 %v235, %v229
        %v238 = vmul.f32 %v236, 1.442695
        %v239 = vpow.pop %v238
        %v240 = vmul.f32 %v237, 1.442695
        %v241 = vpow.pop %v240
        %v242 = vmul.f32 %v231, %v215
        %v243 = vmul.f32 %v233, %v229
        %244 = vadd.xlane.f32.xlu0 %v239
        %v245 = vpop.xlane.xlu0 %244
        %246 = vadd.xlane.f32.xlu0 %v241
        %v247 = vpop.xlane.xlu0 %246
        %v248 = vlog2.pop %v245
        %v249 = vmul.f32 %v248, 0.6931472
        %v250 = vlog2.pop %v247
        %v251 = vmul.f32 %v250, 0.6931472
        %v252 = vadd.f32 %v242, %v249
        %v253 = vadd.f32 %v243, %v251
        %v254 = vld [vmem:[%s164] sm:$0xff]
        %v255 = vld [vmem:[%s164 + $0x8] sm:$0xff]
        %v256 = vlaneseq
        %v257 = vand.u32 %v256, 127
        %258 = vset.pattern.permute.xlu0 0
        %259 = vperm.xlu0 %258, %v254
        %v260 = vpop.permute.xlu0 %259
        %261 = vset.pattern.permute.xlu0 0
        %262 = vperm.xlu0 %261, %v255
        %v263 = vpop.permute.xlu0 %262
        %vm264 = vcmp.eq.s32.totalorder %v257, %v260
        %vm265 = vcmp.eq.s32.totalorder %v257, %v263
        %v266 = vsel %vm264, %v166, 0.0
        %v267 = vsel %vm265, %v167, 0.0
        %268 = vadd.xlane.f32.xlu0 %v266
        %v269 = vpop.xlane.xlu0 %268
        %270 = vadd.xlane.f32.xlu0 %v267
        %v271 = vpop.xlane.xlu0 %270
        %v272 = vmul.f32 %v269, %v215
        %v273 = vmul.f32 %v271, %v229
        %v274 = vsub.f32 %v252, %v272
        %v275 = vsub.f32 %v253, %v273
        %s276 = smul.u32 %s16, 16
        %v277 = vlaneseq
        %v278 = vshrl.u32 %v277, 7
        %v279 = vadd.s32 %v278, 8
        %v280 = vstv %s276
        %v281 = vadd.s32 %v280, %v278
        %v282 = vadd.s32 %v280, %v279
        %vm283 = vcmp.lt.s32.totalorder %v281, 20
        %vm284 = vcmp.lt.s32.totalorder %v282, 20
        %v285 = vsel %vm283, %v274, 0.0
        %v286 = vsel %vm284, %v275, 0.0
        %vm287 = vcmask 7168
        %v288 = vsel %vm287, %v285, 0.0
        %v289 = vsel %vm287, %v286, 0.0
        %v290 = vadd.f32 %v288, %v289
        %291 = vadd.xlane.f32.xlu0 %v290
        %v292 = vpop.xlane.xlu0 %291
        %v293 = vrot.slane %v292, 4
        %v294 = vadd.f32 %v292, %v293
        %v295 = vrot.slane %v294, 2
        %v296 = vadd.f32 %v294, %v295
        %v297 = vrot.slane %v296, 1
        %v298 = vadd.f32 %v296, %v297
        %s299 = vtos %v298
        %v300 = vstv %s299
        %301 = vst [vmem:[%s153] sm:$0xff] %v300
        %s302 = sand.u32 %s76, 1
        %s303 = scalar_lea.sflag [#allocation3], %s302
        %s304 = sand.u32 %s76, 1
        %s305 = smul.addr %s304, 8
        %s306 = scalar_lea.vmem [#allocation2], %s305
        // Predicated region
        $region29: #{tpu_custom_call.1} parent=27 // pred_check
          %p307 = pneg %p86
        $region30: #{tpu_custom_call.1} parent=27 // pred_check_branch
          %309 = sbr.rel (%p307) target = $region32
        $region31: #{tpu_custom_call.1} parent=27 // pred_region
          %311 = vsyncadd %s303, 0
          %s312 = smul.addr %s16, 8
          %s313 = scalar_lea.hbm %s2, %s312
          %s315 = sshll.u32 %s306, 4
          %s316 = int_to_ptr.vmem [resolvable:$true] %s315
          %s317 = sshll.u32 %s313, 4
          %s318 = int_to_ptr.hbm [resolvable:$true] %s317
          %320 = dma.vmem_to_hbm [thread:$0]  %s316, 128, %s318, %s303
        $region32: #{tpu_custom_call.1} parent=27 // pred_fallthru
          _
      $region28: #{tpu_custom_call.1} parent=5 // pred_fallthru
        _
      %p321 = scmp.le.s32.totalorder 2, %s11
      // Predicated region
      $region33: #{tpu_custom_call.1} parent=5 // pred_check
        %p322 = pneg %p321
      $region34: #{tpu_custom_call.1} parent=5 // pred_check_branch
        %324 = sbr.rel (%p322) target = $region36
      $region35: #{tpu_custom_call.1} parent=5 // pred_region
        %s325 = ssub.s32 %s11, 2
        // Predicated region
        $region37: #{tpu_custom_call.1} parent=35 // pred_check
          %p326 = pneg %p92
        $region38: #{tpu_custom_call.1} parent=35 // pred_check_branch
          %328 = sbr.rel (%p326) target = $region40
        $region39: #{tpu_custom_call.1} parent=35 // pred_region
          %s329 = sand.u32 %s77, 1
          %s330 = scalar_lea.sflag [#allocation3], %s329
          %s331 = sand.u32 %s77, 1
          %s332 = smul.addr %s331, 8
          %s333 = scalar_lea.vmem [#allocation2], %s332
          %335 = dma.done %s330, 128
        $region40: #{tpu_custom_call.1} parent=35 // pred_fallthru
          _
      $region36: #{tpu_custom_call.1} parent=5 // pred_fallthru
        _
    $region6: #{tpu_custom_call.1} parent=1 // loop_footer
      %s15 = sadd.s32 1, %s11
    $region7: #{tpu_custom_call.1} parent=1 // loop_footer_branch
      %10 = sbr.rel target = $region3
    $region8: #{tpu_custom_call.1} parent=1 // loop_exit
      _
    %336 = vsyncpa [#allocation3], 1
    %s337 = scalar_lea.sflag [#allocation3], 1
    %338 = vsyncpa %s337, 1

</llo_original>
